<compile_context>
chip_gen: v7x
topology: tpu7x:2x2x1
jax: 0.10.0
libtpu: 0.0.40
codegen_flags: <defaults>
</compile_context>

<pallas_src>
import functools
import numpy as np
import jax
import jax.numpy as jnp
from jax.experimental import pallas as pl
from jax.experimental.pallas import tpu as pltpu


def _round_up(v, m):
    return ((v + m - 1) // m) * m


# ----------------------------------------------------------------------------
# Fused GCN backbone kernel: all layers in one kernel, a_norm resident in VMEM.
#   layer i: h = A_norm @ h @ W_i + b_i  (+ ReLU for hidden layers)
# ----------------------------------------------------------------------------
def _gcn_backbone_kernel(a_ref, x_ref, *refs, num_layers):
    # refs = (w_0, b_0, ..., w_{L-1}, b_{L-1}, o_ref)
    o_ref = refs[2 * num_layers]
    a = a_ref[...]                          # (Np, Np) bf16
    h = x_ref[...].astype(jnp.float32)      # (Np, F0)
    for i in range(num_layers):
        w = refs[2 * i][...].astype(jnp.bfloat16)
        b = refs[2 * i + 1][...]
        f_in, f_out = w.shape
        if f_in <= f_out:
            # (A @ H) @ W : the N^2-sized matmul contracts the smaller feature dim
            ah = jnp.dot(a, h.astype(jnp.bfloat16),
                         preferred_element_type=jnp.float32)
            h = jnp.dot(ah.astype(jnp.bfloat16), w,
                        preferred_element_type=jnp.float32)
        else:
            # A @ (H @ W)
            hw = jnp.dot(h.astype(jnp.bfloat16), w,
                         preferred_element_type=jnp.float32)
            h = jnp.dot(a, hw.astype(jnp.bfloat16),
                        preferred_element_type=jnp.float32)
        h = h + b
        if i < num_layers - 1:
            h = jnp.maximum(h, 0.0)
        # TODO(synk): F.dropout is training-mode only; eval forward == identity.
    o_ref[...] = h.astype(o_ref.dtype)


def gcn_backbone(a_norm_bf16, x, weights, biases):
    n_pad = x.shape[0]
    f_out = weights[-1].shape[1]
    num_layers = len(weights)
    vmem = pl.BlockSpec(memory_space=pltpu.MemorySpace.VMEM)
    args = [a_norm_bf16, x]
    for w, b in zip(weights, biases):
        args.extend([w, b])
    # TODO(synk): for very large N, grid over node-row blocks with
    # dimension_semantics=("parallel",) to use both v7x TensorCores.
    return pl.pallas_call(
        functools.partial(_gcn_backbone_kernel, num_layers=num_layers),
        out_shape=jax.ShapeDtypeStruct((n_pad, f_out), jnp.float32),
        in_specs=[vmem] * len(args),
        out_specs=vmem,
        compiler_params=pltpu.CompilerParams(vmem_limit_bytes=48 * 1024 * 1024),
    )(*args)


# ----------------------------------------------------------------------------
# Loopy BP kernel: all `iters` message-passing iterations + final node beliefs
# in a single kernel.  Message layout is (C, N_sender, N_receiver) with the
# node axes padded to multiples of 128 (lane-dense).
# ----------------------------------------------------------------------------
def _loopy_bp_kernel(unary_ref, binary_ref, adj_ref, scale_ref, logits_ref,
                     msg_ref, pair_ref, *, iters, num_classes):
    # unary_ref  : (C, Np)         VMEM  unary[c, node] log-potentials (0 in padding)
    # binary_ref : (C, C)          SMEM  symmetric pairwise log-potentials
    # adj_ref    : (Np, Np)        VMEM  symmetric 0/1 edge mask (zero-padded)
    # scale_ref  : (Np, Np)        VMEM  symmetric per-edge rezero scale
    # logits_ref : (C, Np)         VMEM  output beliefs (lane-dense)
    # msg_ref    : (C, Np, Np)     VMEM  msg[c, s, r] = message s -> r (0 off-edge)
    # pair_ref   : (C, C, Np, Np)  VMEM  pair[co, ci, s, r] = binary[co, ci]*scale[s, r]
    c = num_classes

    # Loop-invariant pairwise term, filled once (SMEM scalar x node plane).
    scale = scale_ref[...]
    for co in range(c):
        for ci in range(c):
            pair_ref[co, ci] = binary_ref[co, ci] * scale

    msg_ref[...] = jnp.zeros_like(msg_ref)

    @pl.loop(0, iters)
    def _(_):
        unary = unary_ref[...]                      # (C, Np)
        adj = adj_ref[...]                          # (Np, Np)
        msgs = msg_ref[...]                         # (C, s, r), pre-masked by adj
        # reversed view: msgs_rev[c, s, r] = message r -> s (transpose node plane;
        # adjacency/scale symmetry makes this exact — no second LSE pass needed)
        msgs_rev = jnp.swapaxes(msgs, 1, 2)
        # incoming[c, node] = sum over senders; msgs already masked at store time
        incoming = jnp.sum(msgs, axis=1)            # (C, Np)
        # belief of sender s excluding the message r -> s, broadcast over r lanes
        b_ex = (unary + incoming)[:, :, None] - msgs_rev             # (Ci, s, r)
        # all output classes at once: t[co, ci, s, r]
        t = b_ex[None, :, :, :] + pair_ref[...]                      # (Co, Ci, s, r)
        m = jnp.max(t, axis=1)                                       # (Co, s, r)
        m_new = m + jnp.log(jnp.sum(jnp.exp(t - m[:, None]), axis=1))
        # normalize each message over classes for numerical stability
        mc = jnp.max(m_new, axis=0, keepdims=True)
        m_new = m_new - (mc + jnp.log(jnp.sum(jnp.exp(m_new - mc), axis=0,
                                              keepdims=True)))
        # masked store keeps off-edge / padded messages exactly zero (required by
        # the unmasked `incoming` reduction above)
        msg_ref[...] = m_new * adj[None, :, :]

    logits_ref[...] = (unary_ref[...]
                       + jnp.sum(msg_ref[...], axis=1)).astype(logits_ref.dtype)


def loopy_bp_node_logits(unary_t, binary, adj, scale, iters):
    c, n_pad = unary_t.shape
    vmem = pl.BlockSpec(memory_space=pltpu.MemorySpace.VMEM)
    smem = pl.BlockSpec(memory_space=pltpu.MemorySpace.SMEM)
    # TODO(synk): for large graphs, tile the receiver axis (grid + HBM-resident
    # message buffers) so the scratch fits v7x's 64 MiB VMEM and both
    # TensorCores are used; whole-array blocks are fine at these sizes.
    return pl.pallas_call(
        functools.partial(_loopy_bp_kernel, iters=iters, num_classes=c),
        out_shape=jax.ShapeDtypeStruct((c, n_pad), jnp.float32),
        in_specs=[vmem, smem, vmem, vmem],
        out_specs=vmem,
        scratch_shapes=[pltpu.VMEM((c, n_pad, n_pad), jnp.float32),
                        pltpu.VMEM((c, c, n_pad, n_pad), jnp.float32)],
        compiler_params=pltpu.CompilerParams(vmem_limit_bytes=48 * 1024 * 1024),
    )(unary_t, binary, adj, scale)


# ----------------------------------------------------------------------------
# EPFGNN model (parameters built deterministically in-script)
# ----------------------------------------------------------------------------
class EPFGNNPallas:
    def __init__(self, key, in_channels, num_classes, num_hidden, drop_rate,
                 num_layers, train_mask, target, deg, rezero_size):
        feature_list = [in_channels, num_hidden, num_classes]
        for _ in range(num_layers - 2):
            feature_list.insert(-1, num_hidden)
        self.feature_list = feature_list

        keys = jax.random.split(key, len(feature_list))
        self.weights, self.biases = [], []
        for i in range(len(feature_list) - 1):
            fan_in, fan_out = feature_list[i], feature_list[i + 1]
            w = jax.random.normal(keys[i], (fan_in, fan_out), jnp.float32)
            self.weights.append(w / np.sqrt(fan_in))
            self.biases.append(jnp.zeros((1, fan_out), jnp.float32))

        self.binary = (jax.random.normal(keys[-1], (num_classes, num_classes),
                                         jnp.float32)
                       + jnp.eye(num_classes, dtype=jnp.float32)) / num_classes
        self.rezero_coefficients = jnp.zeros((rezero_size,), jnp.float32)

        self.train_mask = np.asarray(train_mask, dtype=bool)
        self.target = jnp.asarray(target, dtype=jnp.int32)
        self.deg = jnp.asarray(deg, dtype=jnp.float32)   # only used by up_BP path
        self.drop_rate = drop_rate
        self.num_classes = num_classes

    # -------- glue: dense graph tensors from a directed edge_index (2, E) ----
    def _build_graph(self, edge_index, n):
        src = np.asarray(edge_index[0])
        dst = np.asarray(edge_index[1])
        adj = jnp.zeros((n, n), jnp.float32).at[src, dst].set(1.0)
        adj = jnp.maximum(adj, adj.T)
        # GCNConv normalization: D^-1/2 (A + I) D^-1/2
        a_hat = adj + jnp.eye(n, dtype=jnp.float32)
        d_inv = 1.0 / jnp.sqrt(jnp.sum(a_hat, axis=1))
        a_norm = d_inv[:, None] * a_hat * d_inv[None, :]
        # rezero_coefficients.repeat(2): one coefficient per undirected edge,
        # applied to both directed orientations -> symmetric scale matrix.
        r_full = jnp.concatenate([self.rezero_coefficients,
                                  self.rezero_coefficients])
        scale = jnp.zeros((n, n), jnp.float32).at[src, dst].set(r_full)
        scale = jnp.maximum(scale, scale.T)
        return adj, a_norm, scale

    # -------- glue: exact port of EPFGNN.loopy_bp unary/binary preprocessing -
    def _loopy_preprocess(self, unary, binary):
        neg_u = -unary
        neg_b = -binary
        train_idx = np.nonzero(self.train_mask)[0]
        t = train_idx.shape[0]
        gt = self.target[train_idx]                    # (T,)
        gt_ue = neg_u[train_idx, gt]                   # gather(dim=1)
        neg_u = neg_u.at[train_idx, :].set(100000.0)
        # Matches torch `unary.scatter_(1, gt.view(-1,1), gt_ue)`: writes rows
        # 0..T-1 (the torch code's quirk), NOT rows train_idx.  Intentional port.
        neg_u = neg_u.at[jnp.arange(t), gt].set(gt_ue)
        neg_u = neg_u - jnp.min(neg_u, axis=1, keepdims=True)
        neg_b = neg_b - jnp.min(neg_b)
        neg_u = jnp.minimum(neg_u, 20.0)
        return -neg_u, -neg_b

    def forward(self, x, edge_index):
        n = x.shape[0]
        n_pad = _round_up(n, 128)          # lane-aligned node count
        adj, a_norm, scale = self._build_graph(edge_index, n)

        pad2 = ((0, n_pad - n), (0, n_pad - n))
        a_norm_p = jnp.pad(a_norm, pad2).astype(jnp.bfloat16)
        adj_p = jnp.pad(adj, pad2)
        scale_p = jnp.pad(scale, pad2)
        x_p = jnp.pad(x.astype(jnp.float32), ((0, n_pad - n), (0, 0)))

        # ---- fused GCN backbone (Pallas, bf16 MXU inputs, f32 accumulate) ----
        unary = gcn_backbone(a_norm_p, x_p, self.weights, self.biases)[:n]
        binary = (self.binary + self.binary.T) / 2.0      # (C, C) symmetric

        # TODO(synk): BPLeafToRoot_edge_rezero (self.up_BP) source not provided;
        # its output Z is not used by forward()'s return value, so it is skipped.

        unary_bp, binary_bp = self._loopy_preprocess(unary, binary)

        # lane-dense (C, Np) unary for the BP kernel (padded nodes -> 0 unary,
        # they have no edges so they never influence real nodes)
        unary_bp_t = jnp.pad(unary_bp.T, ((0, 0), (0, n_pad - n)))

        # TODO(synk): LoopyBP class source not provided; node_logits() is
        # implemented as standard log-space sum-product loopy BP beliefs
        # (unary + sum of incoming messages), run for 100 iterations as in
        # the reference code.
        logits_t = loopy_bp_node_logits(unary_bp_t, binary_bp, adj_p, scale_p,
                                        iters=100)
        return logits_t.T[:n]


# ----------------------------------------------------------------------------
if __name__ == "__main__":
    key = jax.random.PRNGKey(0)
    N, in_channels, num_hidden, num_classes, num_layers = 16, 8, 32, 4, 2

    # ring graph, both directions listed (forward edges then reversed edges),
    # consistent with rezero_coefficients.repeat(2) per-undirected-edge scaling
    ring = np.arange(N)
    src_u, dst_u = ring, (ring + 1) % N
    edge_index = np.stack([np.concatenate([src_u, dst_u]),
                           np.concatenate([dst_u, src_u])])   # (2, 2N)
    rezero_size = N                                           # one per undirected edge

    train_mask = np.zeros(N, dtype=bool)
    train_mask[:4] = True

    k_x, k_t, k_m = jax.random.split(key, 3)
    target = jax.random.randint(k_t, (N,), 0, num_classes)
    deg = jnp.asarray(np.bincount(edge_index[0], minlength=N),
                      jnp.float32)[:, None]

    model = EPFGNNPallas(k_m, in_channels, num_classes, num_hidden,
                         drop_rate=0.5, num_layers=num_layers,
                         train_mask=train_mask, target=target, deg=deg,
                         rezero_size=rezero_size)

    x = jax.random.normal(k_x, (N, in_channels), jnp.float32)
    logits = model.forward(x, edge_index)
    jax.block_until_ready(logits)
    assert logits.shape == (N, num_classes)
    print("KERNEL_OK")
</pallas_src>

<mosaic_0001>
module attributes {stable_mosaic.version = 11 : i64} {
  func.func @_gcn_backbone_kernel(%arg0: memref<128x128xbf16, #tpu.memory_space<vmem>>, %arg1: memref<128x8xf32, #tpu.memory_space<vmem>>, %arg2: memref<8x32xf32, #tpu.memory_space<vmem>>, %arg3: memref<1x32xf32, #tpu.memory_space<vmem>>, %arg4: memref<32x4xf32, #tpu.memory_space<vmem>>, %arg5: memref<1x4xf32, #tpu.memory_space<vmem>>, %arg6: memref<128x4xf32, #tpu.memory_space<vmem>>) attributes {dimension_semantics = [], scalar_prefetch = 0 : i64, scratch_operands = 0 : i64, tpu.core_type = #tpu.core_type<tc>} {
    %c0 = arith.constant 0 : index
    %c0_0 = arith.constant 0 : index
    %0 = vector.load %arg0[%c0, %c0_0] : memref<128x128xbf16, #tpu.memory_space<vmem>>, vector<128x128xbf16>
    %c0_1 = arith.constant 0 : index
    %c0_2 = arith.constant 0 : index
    %1 = vector.load %arg1[%c0_1, %c0_2] : memref<128x8xf32, #tpu.memory_space<vmem>>, vector<128x8xf32>
    %c0_3 = arith.constant 0 : index
    %c0_4 = arith.constant 0 : index
    %2 = vector.load %arg2[%c0_3, %c0_4] : memref<8x32xf32, #tpu.memory_space<vmem>>, vector<8x32xf32>
    %3 = arith.truncf %2 : vector<8x32xf32> to vector<8x32xbf16>
    %c0_5 = arith.constant 0 : index
    %c0_6 = arith.constant 0 : index
    %4 = vector.load %arg3[%c0_5, %c0_6] : memref<1x32xf32, #tpu.memory_space<vmem>>, vector<1x32xf32>
    %5 = arith.truncf %1 : vector<128x8xf32> to vector<128x8xbf16>
    %cst = arith.constant dense<0.000000e+00> : vector<128x8xf32>
    %6 = tpu.matmul %0, %5, %cst {dimension_numbers = #tpu.dot_dimension_numbers<[1], [0], [0], [1], [0, 0, 1, 1], [], []>} : vector<128x128xbf16>, vector<128x8xbf16>, vector<128x8xf32> -> vector<128x8xf32>
    %7 = arith.truncf %6 : vector<128x8xf32> to vector<128x8xbf16>
    %cst_7 = arith.constant dense<0.000000e+00> : vector<128x32xf32>
    %8 = tpu.matmul %7, %3, %cst_7 {dimension_numbers = #tpu.dot_dimension_numbers<[1], [0], [0], [1], [0, 0, 1, 1], [], []>} : vector<128x8xbf16>, vector<8x32xbf16>, vector<128x32xf32> -> vector<128x32xf32>
    %9 = vector.broadcast %4 : vector<1x32xf32> to vector<128x32xf32>
    %10 = arith.addf %8, %9 : vector<128x32xf32>
    %cst_8 = arith.constant 0.000000e+00 : f32
    %11 = vector.broadcast %cst_8 : f32 to vector<128x32xf32>
    %12 = arith.maximumf %10, %11 : vector<128x32xf32>
    %c0_9 = arith.constant 0 : index
    %c0_10 = arith.constant 0 : index
    %13 = vector.load %arg4[%c0_9, %c0_10] : memref<32x4xf32, #tpu.memory_space<vmem>>, vector<32x4xf32>
    %14 = arith.truncf %13 : vector<32x4xf32> to vector<32x4xbf16>
    %c0_11 = arith.constant 0 : index
    %c0_12 = arith.constant 0 : index
    %15 = vector.load %arg5[%c0_11, %c0_12] : memref<1x4xf32, #tpu.memory_space<vmem>>, vector<1x4xf32>
    %16 = arith.truncf %12 : vector<128x32xf32> to vector<128x32xbf16>
    %cst_13 = arith.constant dense<0.000000e+00> : vector<128x4xf32>
    %17 = tpu.matmul %16, %14, %cst_13 {dimension_numbers = #tpu.dot_dimension_numbers<[1], [0], [0], [1], [0, 0, 1, 1], [], []>} : vector<128x32xbf16>, vector<32x4xbf16>, vector<128x4xf32> -> vector<128x4xf32>
    %18 = arith.truncf %17 : vector<128x4xf32> to vector<128x4xbf16>
    %cst_14 = arith.constant dense<0.000000e+00> : vector<128x4xf32>
    %19 = tpu.matmul %0, %18, %cst_14 {dimension_numbers = #tpu.dot_dimension_numbers<[1], [0], [0], [1], [0, 0, 1, 1], [], []>} : vector<128x128xbf16>, vector<128x4xbf16>, vector<128x4xf32> -> vector<128x4xf32>
    %20 = vector.broadcast %15 : vector<1x4xf32> to vector<128x4xf32>
    %21 = arith.addf %19, %20 : vector<128x4xf32>
    %c0_15 = arith.constant 0 : index
    %c0_16 = arith.constant 0 : index
    %22 = vector.load %arg6[%c0_15, %c0_16] : memref<128x4xf32, #tpu.memory_space<vmem>>, vector<128x4xf32>
    tpu.vector_store %arg6[%c0_15, %c0_16], %21 {strides = array<i32>} : memref<128x4xf32, #tpu.memory_space<vmem>>, vector<128x4xf32>,
    return
  }
}

</mosaic_0001>

<llo_original>
// kernel: tpu_custom_call.1
$region0: #{tpu_custom_call.1}
  #allocation0 [shape = 'u32[]', space=smem, size = 0x4, offset = 0x4, fixed_abs, tag = 'smem constant byte address 0x4 - core index']
  #allocation1 [shape = 'u32[144,128]{1,0:T(1,128)}', space=vmem, size = 0x12000, scoped, tag = 'internal scratch']
  %s0 = inlined_call_operand.vmem [shape: bf16[128,128], index: 0, kind: input, shape index: {}]
  %s1 = inlined_call_operand.vmem [shape: f32[128,8], index: 1, kind: input, shape index: {}]
  %s2 = inlined_call_operand.vmem [shape: f32[8,32], index: 2, kind: input, shape index: {}]
  %s3 = inlined_call_operand.vmem [shape: f32[1,32], index: 3, kind: input, shape index: {}]
  %s4 = inlined_call_operand.vmem [shape: f32[32,4], index: 4, kind: input, shape index: {}]
  %s5 = inlined_call_operand.vmem [shape: f32[1,4], index: 5, kind: input, shape index: {}]
  %s6 = inlined_call_operand.vmem [shape: f32[128,4], index: 6, kind: output, shape index: {}]
  %s7 = sld [smem:[#allocation0]]
  $region34: #{tpu_custom_call.1} parent=0
    _
  %s9 = ssub.s32 1, %s7
  %s10 = scalar_select 0, %s9, %s7
  // Predicated region
  $region2: #{tpu_custom_call.1} parent=0 // pred_check
    _
  $region3: #{tpu_custom_call.1} parent=0 // pred_check_branch
    %12 = sbr.rel (0) target = $region5
  $region4: #{tpu_custom_call.1} parent=0 // pred_region
    _
  $region5: #{tpu_custom_call.1} parent=0 // pred_fallthru
    _
  // Predicated region
  $region6: #{tpu_custom_call.1} parent=0 // pred_check
    _
  $region7: #{tpu_custom_call.1} parent=0 // pred_check_branch
    %14 = sbr.rel (0) target = $region9
  $region8: #{tpu_custom_call.1} parent=0 // pred_region
    _
  $region9: #{tpu_custom_call.1} parent=0 // pred_fallthru
    _
  // Predicated region
  $region10: #{tpu_custom_call.1} parent=0 // pred_check
    _
  $region11: #{tpu_custom_call.1} parent=0 // pred_check_branch
    %16 = sbr.rel (0) target = $region13
  $region12: #{tpu_custom_call.1} parent=0 // pred_region
    _
  $region13: #{tpu_custom_call.1} parent=0 // pred_fallthru
    _
  // Predicated region
  $region14: #{tpu_custom_call.1} parent=0 // pred_check
    _
  $region15: #{tpu_custom_call.1} parent=0 // pred_check_branch
    %18 = sbr.rel (0) target = $region17
  $region16: #{tpu_custom_call.1} parent=0 // pred_region
    _
  $region17: #{tpu_custom_call.1} parent=0 // pred_fallthru
    _
  // Predicated region
  $region18: #{tpu_custom_call.1} parent=0 // pred_check
    _
  $region19: #{tpu_custom_call.1} parent=0 // pred_check_branch
    %20 = sbr.rel (0) target = $region21
  $region20: #{tpu_custom_call.1} parent=0 // pred_region
    _
  $region21: #{tpu_custom_call.1} parent=0 // pred_fallthru
    _
  // Predicated region
  $region22: #{tpu_custom_call.1} parent=0 // pred_check
    _
  $region23: #{tpu_custom_call.1} parent=0 // pred_check_branch
    %22 = sbr.rel (0) target = $region25
  $region24: #{tpu_custom_call.1} parent=0 // pred_region
    _
  $region25: #{tpu_custom_call.1} parent=0 // pred_fallthru
    _
  %v24 = vld [vmem:[%s0] sm:$0xf]
  %v25 = vld [vmem:[%s0 + $0x4] sm:$0xf]
  %v26 = vld [vmem:[%s0 + $0x8] sm:$0xf]
  %v27 = vld [vmem:[%s0 + $0xc] sm:$0xf]
  %v28 = vld [vmem:[%s0 + $0x10] sm:$0xf]
  %v29 = vld [vmem:[%s0 + $0x14] sm:$0xf]
  %v30 = vld [vmem:[%s0 + $0x18] sm:$0xf]
  %v31 = vld [vmem:[%s0 + $0x1c] sm:$0xf]
  %v32 = vld [vmem:[%s0 + $0x20] sm:$0xf]
  %v33 = vld [vmem:[%s0 + $0x24] sm:$0xf]
  %v34 = vld [vmem:[%s0 + $0x28] sm:$0xf]
  %v35 = vld [vmem:[%s0 + $0x2c] sm:$0xf]
  %v36 = vld [vmem:[%s0 + $0x30] sm:$0xf]
  %v37 = vld [vmem:[%s0 + $0x34] sm:$0xf]
  %v38 = vld [vmem:[%s0 + $0x38] sm:$0xf]
  %v39 = vld [vmem:[%s0 + $0x3c] sm:$0xf]
  %v40 = vld [vmem:[%s1] sm:$0xff]
  %v41 = vld [vmem:[%s1 + $0x8] sm:$0xff]
  %v42 = vld [vmem:[%s1 + $0x10] sm:$0xff]
  %v43 = vld [vmem:[%s1 + $0x18] sm:$0xff]
  %v44 = vld [vmem:[%s1 + $0x20] sm:$0xff]
  %v45 = vld [vmem:[%s1 + $0x28] sm:$0xff]
  %v46 = vld [vmem:[%s1 + $0x30] sm:$0xff]
  %v47 = vld [vmem:[%s1 + $0x38] sm:$0xff]
  %v48 = vld [vmem:[%s1 + $0x40] sm:$0xff]
  %v49 = vld [vmem:[%s1 + $0x48] sm:$0xff]
  %v50 = vld [vmem:[%s1 + $0x50] sm:$0xff]
  %v51 = vld [vmem:[%s1 + $0x58] sm:$0xff]
  %v52 = vld [vmem:[%s1 + $0x60] sm:$0xff]
  %v53 = vld [vmem:[%s1 + $0x68] sm:$0xff]
  %v54 = vld [vmem:[%s1 + $0x70] sm:$0xff]
  %v55 = vld [vmem:[%s1 + $0x78] sm:$0xff]
  %v56 = vld [vmem:[%s2] sm:$0xff]
  %v57 = vpack.c.bf16 %v56, %v56
  %v58 = vld [vmem:[%s3] sm:$0x1]
  %v59 = vpack.c.bf16 %v41, %v40
  %v60 = vpack.c.bf16 %v43, %v42
  %v61 = vpack.c.bf16 %v45, %v44
  %v62 = vpack.c.bf16 %v47, %v46
  %v63 = vpack.c.bf16 %v49, %v48
  %v64 = vpack.c.bf16 %v51, %v50
  %v65 = vpack.c.bf16 %v53, %v52
  %v66 = vpack.c.bf16 %v55, %v54
  %v83 = vunpack.c.l.b16 %v24
  %v84 = vunpack.c.l.b16 %v25
  %v85 = vunpack.c.l.b16 %v26
  %v86 = vunpack.c.l.b16 %v27
  %v87 = vunpack.c.l.b16 %v28
  %v88 = vunpack.c.l.b16 %v29
  %v89 = vunpack.c.l.b16 %v30
  %v90 = vunpack.c.l.b16 %v31
  %v91 = vunpack.c.l.b16 %v32
  %v92 = vunpack.c.l.b16 %v33
  %v93 = vunpack.c.l.b16 %v34
  %v94 = vunpack.c.l.b16 %v35
  %v95 = vunpack.c.l.b16 %v36
  %v96 = vunpack.c.l.b16 %v37
  %v97 = vunpack.c.l.b16 %v38
  %v98 = vunpack.c.l.b16 %v39
  %v99 = vpack.c.b16 %v84, %v83
  %v100 = vpack.c.b16 %v86, %v85
  %v101 = vpack.c.b16 %v88, %v87
  %v102 = vpack.c.b16 %v90, %v89
  %v103 = vpack.c.b16 %v92, %v91
  %v104 = vpack.c.b16 %v94, %v93
  %v105 = vpack.c.b16 %v96, %v95
  %v106 = vpack.c.b16 %v98, %v97
  %115 = vmatprep.subr.bf16.mxu0 0
  %116 = vmatpush1.bf16.msra.mxu0 %v59
  %117 = vmatprep.subr.bf16.mxu0 0
  %118 = vmatpush1.bf16.msra.mxu0 %v60
  %119 = vmatprep.subr.bf16.mxu0 0
  %120 = vmatpush1.bf16.msra.mxu0 %v61
  %121 = vmatprep.subr.bf16.mxu0 0
  %122 = vmatpush1.bf16.msra.mxu0 %v62
  %123 = vmatprep.subr.bf16.mxu0 0
  %124 = vmatpush1.bf16.msra.mxu0 %v63
  %125 = vmatprep.subr.bf16.mxu0 0
  %126 = vmatpush1.bf16.msra.mxu0 %v64
  %127 = vmatprep.subr.bf16.mxu0 0
  %128 = vmatpush1.bf16.msra.mxu0 %v65
  %129 = vmatprep.subr.bf16.mxu0 0
  %130 = vmatpush1.bf16.msra.mxu0 %v66
  %131 = vmatprep.subr.bf16.mxu0 0
  %132 = vmatpush1.bf16.msra.mxu0 0
  %133 = vmatprep.subr.bf16.mxu0 0
  %134 = vmatpush1.bf16.msra.mxu0 0
  %135 = vmatprep.subr.bf16.mxu0 0
  %136 = vmatpush1.bf16.msra.mxu0 0
  %137 = vmatprep.subr.bf16.mxu0 0
  %138 = vmatpush1.bf16.msra.mxu0 0
  %139 = vmatprep.subr.bf16.mxu0 0
  %140 = vmatpush1.bf16.msra.mxu0 0
  %141 = vmatprep.subr.bf16.mxu0 0
  %142 = vmatpush1.bf16.msra.mxu0 0
  %143 = vmatprep.subr.bf16.mxu0 0
  %144 = vmatpush1.bf16.msra.mxu0 0
  %145 = vmatprep.subr.bf16.mxu0 0
  %146 = vmatpush1.bf16.msra.mxu0 0
  %147 = vmatprep.mubr.bf16.mxu0 0
  %148 = vmatmul.mubr.bf16.gmra.mrb[0].mxu0 %v99
  %v149 = vpop.f32.mrb[0].mxu0
  %v150 = vadd.f32 0.0, %v149
  %v151 = vpop.f32.mrb[0].mxu0
  %v152 = vpop.f32.mrb[0].mxu0
  %v153 = vadd.f32 0.0, %v152
  %v154 = vpop.f32.mrb[0].mxu0
  %155 = vmatprep.mubr.bf16.mxu0 0
  %156 = vmatmul.mubr.bf16.gmra.mrb[0].mxu0 %v100
  %v157 = vpop.f32.mrb[0].mxu0
  %v158 = vadd.f32 0.0, %v157
  %v159 = vpop.f32.mrb[0].mxu0
  %v160 = vpop.f32.mrb[0].mxu0
  %v161 = vadd.f32 0.0, %v160
  %v162 = vpop.f32.mrb[0].mxu0
  %163 = vmatprep.mubr.bf16.mxu0 0
  %164 = vmatmul.mubr.bf16.gmra.mrb[0].mxu0 %v101
  %v165 = vpop.f32.mrb[0].mxu0
  %v166 = vadd.f32 0.0, %v165
  %v167 = vpop.f32.mrb[0].mxu0
  %v168 = vpop.f32.mrb[0].mxu0
  %v169 = vadd.f32 0.0, %v168
  %v170 = vpop.f32.mrb[0].mxu0
  %171 = vmatprep.mubr.bf16.mxu0 0
  %172 = vmatmul.mubr.bf16.gmra.mrb[0].mxu0 %v102
  %v173 = vpop.f32.mrb[0].mxu0
  %v174 = vadd.f32 0.0, %v173
  %v175 = vpop.f32.mrb[0].mxu0
  %v176 = vpop.f32.mrb[0].mxu0
  %v177 = vadd.f32 0.0, %v176
  %v178 = vpop.f32.mrb[0].mxu0
  %179 = vmatprep.mubr.bf16.mxu0 0
  %180 = vmatmul.mubr.bf16.gmra.mrb[0].mxu0 %v103
  %v181 = vpop.f32.mrb[0].mxu0
  %v182 = vadd.f32 0.0, %v181
  %v183 = vpop.f32.mrb[0].mxu0
  %v184 = vpop.f32.mrb[0].mxu0
  %v185 = vadd.f32 0.0, %v184
  %v186 = vpop.f32.mrb[0].mxu0
  %187 = vmatprep.mubr.bf16.mxu0 0
  %188 = vmatmul.mubr.bf16.gmra.mrb[0].mxu0 %v104
  %v189 = vpop.f32.mrb[0].mxu0
  %v190 = vadd.f32 0.0, %v189
  %v191 = vpop.f32.mrb[0].mxu0
  %v192 = vpop.f32.mrb[0].mxu0
  %v193 = vadd.f32 0.0, %v192
  %v194 = vpop.f32.mrb[0].mxu0
  %195 = vmatprep.mubr.bf16.mxu0 0
  %196 = vmatmul.mubr.bf16.gmra.mrb[0].mxu0 %v105
  %v197 = vpop.f32.mrb[0].mxu0
  %v198 = vadd.f32 0.0, %v197
  %v199 = vpop.f32.mrb[0].mxu0
  %v200 = vpop.f32.mrb[0].mxu0
  %v201 = vadd.f32 0.0, %v200
  %v202 = vpop.f32.mrb[0].mxu0
  %203 = vmatprep.mubr.bf16.mxu0 0
  %204 = vmatmul.mubr.bf16.gmra.mrb[0].mxu0 %v106
  %v205 = vpop.f32.mrb[0].mxu0
  %v206 = vadd.f32 0.0, %v205
  %v207 = vpop.f32.mrb[0].mxu0
  %v208 = vpop.f32.mrb[0].mxu0
  %v209 = vadd.f32 0.0, %v208
  %v210 = vpop.f32.mrb[0].mxu0
  %211 = vdwg.mxu0
  %v212 = vpack.c.bf16 %v153, %v150
  %v213 = vpack.c.bf16 %v161, %v158
  %v214 = vpack.c.bf16 %v169, %v166
  %v215 = vpack.c.bf16 %v177, %v174
  %v216 = vpack.c.bf16 %v185, %v182
  %v217 = vpack.c.bf16 %v193, %v190
  %v218 = vpack.c.bf16 %v201, %v198
  %v219 = vpack.c.bf16 %v209, %v206
  %v221 = vlaneseq
  %v222 = vshrl.u32 %v221, 7
  %v223 = vsub.s32 0, %v222
  %v224 = vrot.slane %v58, %v223
  %vm226 = vcmask 64512
  %v228 = vsel %vm226, %v212, 0
  %v231 = vsel %vm226, %v213, 0
  %v234 = vsel %vm226, %v214, 0
  %v237 = vsel %vm226, %v215, 0
  %v240 = vsel %vm226, %v216, 0
  %v243 = vsel %vm226, %v217, 0
  %v246 = vsel %vm226, %v218, 0
  %v249 = vsel %vm226, %v219, 0
  %vm251 = vcmask 1043456
  %v253 = vsel %vm251, %v57, 0
  %255 = vmatprep.subr.bf16.mxu0 0
  %256 = vmatpush1.bf16.msra.mxu0 %v253
  %257 = vmatprep.subr.bf16.mxu0 0
  %258 = vmatpush1.bf16.msra.mxu0 0
  %259 = vmatprep.subr.bf16.mxu0 0
  %260 = vmatpush1.bf16.msra.mxu0 0
  %261 = vmatprep.subr.bf16.mxu0 0
  %262 = vmatpush1.bf16.msra.mxu0 0
  %263 = vmatprep.subr.bf16.mxu0 0
  %264 = vmatpush1.bf16.msra.mxu0 0
  %265 = vmatprep.subr.bf16.mxu0 0
  %266 = vmatpush1.bf16.msra.mxu0 0
  %267 = vmatprep.subr.bf16.mxu0 0
  %268 = vmatpush1.bf16.msra.mxu0 0
  %269 = vmatprep.subr.bf16.mxu0 0
  %270 = vmatpush1.bf16.msra.mxu0 0
  %271 = vmatprep.subr.bf16.mxu0 0
  %272 = vmatpush1.bf16.msra.mxu0 0
  %273 = vmatprep.subr.bf16.mxu0 0
  %274 = vmatpush1.bf16.msra.mxu0 0
  %275 = vmatprep.subr.bf16.mxu0 0
  %276 = vmatpush1.bf16.msra.mxu0 0
  %277 = vmatprep.subr.bf16.mxu0 0
  %278 = vmatpush1.bf16.msra.mxu0 0
  %279 = vmatprep.subr.bf16.mxu0 0
  %280 = vmatpush1.bf16.msra.mxu0 0
  %281 = vmatprep.subr.bf16.mxu0 0
  %282 = vmatpush1.bf16.msra.mxu0 0
  %283 = vmatprep.subr.bf16.mxu0 0
  %284 = vmatpush1.bf16.msra.mxu0 0
  %285 = vmatprep.subr.bf16.mxu0 0
  %286 = vmatpush1.bf16.msra.mxu0 0
  %287 = vmatprep.mubr.bf16.mxu0 0
  %288 = vmatmul.mubr.bf16.gmra.mrb[0].mxu0 %v228
  %v289 = vpop.f32.mrb[0].mxu0
  %v290 = vadd.f32 %v224, %v289
  %v291 = vpop.f32.mrb[0].mxu0
  %v292 = vpop.f32.mrb[0].mxu0
  %v293 = vadd.f32 %v224, %v292
  %v294 = vpop.f32.mrb[0].mxu0
  %295 = vmatprep.mubr.bf16.mxu0 0
  %296 = vmatmul.mubr.bf16.gmra.mrb[0].mxu0 %v231
  %v297 = vpop.f32.mrb[0].mxu0
  %v298 = vadd.f32 %v224, %v297
  %v299 = vpop.f32.mrb[0].mxu0
  %v300 = vpop.f32.mrb[0].mxu0
  %v301 = vadd.f32 %v224, %v300
  %v302 = vpop.f32.mrb[0].mxu0
  %303 = vmatprep.mubr.bf16.mxu0 0
  %304 = vmatmul.mubr.bf16.gmra.mrb[0].mxu0 %v234
  %v305 = vpop.f32.mrb[0].mxu0
  %v306 = vadd.f32 %v224, %v305
  %v307 = vpop.f32.mrb[0].mxu0
  %v308 = vpop.f32.mrb[0].mxu0
  %v309 = vadd.f32 %v224, %v308
  %v310 = vpop.f32.mrb[0].mxu0
  %311 = vmatprep.mubr.bf16.mxu0 0
  %312 = vmatmul.mubr.bf16.gmra.mrb[0].mxu0 %v237
  %v313 = vpop.f32.mrb[0].mxu0
  %v314 = vadd.f32 %v224, %v313
  %v315 = vpop.f32.mrb[0].mxu0
  %v316 = vpop.f32.mrb[0].mxu0
  %v317 = vadd.f32 %v224, %v316
  %v318 = vpop.f32.mrb[0].mxu0
  %319 = vmatprep.mubr.bf16.mxu0 0
  %320 = vmatmul.mubr.bf16.gmra.mrb[0].mxu0 %v240
  %v321 = vpop.f32.mrb[0].mxu0
  %v322 = vadd.f32 %v224, %v321
  %v323 = vpop.f32.mrb[0].mxu0
  %v324 = vpop.f32.mrb[0].mxu0
  %v325 = vadd.f32 %v224, %v324
  %v326 = vpop.f32.mrb[0].mxu0
  %327 = vmatprep.mubr.bf16.mxu0 0
  %328 = vmatmul.mubr.bf16.gmra.mrb[0].mxu0 %v243
  %v329 = vpop.f32.mrb[0].mxu0
  %v330 = vadd.f32 %v224, %v329
  %v331 = vpop.f32.mrb[0].mxu0
  %v332 = vpop.f32.mrb[0].mxu0
  %v333 = vadd.f32 %v224, %v332
  %v334 = vpop.f32.mrb[0].mxu0
  %335 = vmatprep.mubr.bf16.mxu0 0
  %336 = vmatmul.mubr.bf16.gmra.mrb[0].mxu0 %v246
  %v337 = vpop.f32.mrb[0].mxu0
  %v338 = vadd.f32 %v224, %v337
  %v339 = vpop.f32.mrb[0].mxu0
  %v340 = vpop.f32.mrb[0].mxu0
  %v341 = vadd.f32 %v224, %v340
  %v342 = vpop.f32.mrb[0].mxu0
  %343 = vmatprep.mubr.bf16.mxu0 0
  %344 = vmatmul.mubr.bf16.gmra.mrb[0].mxu0 %v249
  %v345 = vpop.f32.mrb[0].mxu0
  %v346 = vadd.f32 %v224, %v345
  %v347 = vpop.f32.mrb[0].mxu0
  %v348 = vpop.f32.mrb[0].mxu0
  %v349 = vadd.f32 %v224, %v348
  %v350 = vpop.f32.mrb[0].mxu0
  %351 = vdwg.mxu0
  %v352 = vmax.f32 %v290, 0.0
  %v353 = vmax.f32 %v293, 0.0
  %v354 = vmax.f32 %v298, 0.0
  %v355 = vmax.f32 %v301, 0.0
  %v356 = vmax.f32 %v306, 0.0
  %v357 = vmax.f32 %v309, 0.0
  %v358 = vmax.f32 %v314, 0.0
  %v359 = vmax.f32 %v317, 0.0
  %v360 = vmax.f32 %v322, 0.0
  %v361 = vmax.f32 %v325, 0.0
  %v362 = vmax.f32 %v330, 0.0
  %v363 = vmax.f32 %v333, 0.0
  %v364 = vmax.f32 %v338, 0.0
  %v365 = vmax.f32 %v341, 0.0
  %v366 = vmax.f32 %v346, 0.0
  %v367 = vmax.f32 %v349, 0.0
  %v368 = vld [vmem:[%s4] sm:$0xff]
  %v369 = vld [vmem:[%s4 + $0x8] sm:$0xff]
  %v370 = vld [vmem:[%s4 + $0x10] sm:$0xff]
  %v371 = vld [vmem:[%s4 + $0x18] sm:$0xff]
  %v372 = vpack.c.bf16 %v369, %v368
  %v373 = vpack.c.bf16 %v371, %v370
  %v374 = vld [vmem:[%s5] sm:$0x1]
  %v375 = vpack.c.bf16 %v353, %v352
  %v376 = vpack.c.bf16 %v355, %v354
  %v377 = vpack.c.bf16 %v357, %v356
  %v378 = vpack.c.bf16 %v359, %v358
  %v379 = vpack.c.bf16 %v361, %v360
  %v380 = vpack.c.bf16 %v363, %v362
  %v381 = vpack.c.bf16 %v365, %v364
  %v382 = vpack.c.bf16 %v367, %v366
  %vm383 = vcmask 261120
  %v385 = vsel %vm383, %v375, 0
  %v388 = vsel %vm383, %v376, 0
  %v391 = vsel %vm383, %v377, 0
  %v394 = vsel %vm383, %v378, 0
  %v397 = vsel %vm383, %v379, 0
  %v400 = vsel %vm383, %v380, 0
  %v403 = vsel %vm383, %v381, 0
  %v406 = vsel %vm383, %v382, 0
  %408 = vmatprep.subr.bf16.mxu0 0
  %409 = vmatpush1.bf16.msra.mxu0 %v372
  %410 = vmatprep.subr.bf16.mxu0 0
  %411 = vmatpush1.bf16.msra.mxu0 %v373
  %412 = vmatprep.subr.bf16.mxu0 0
  %413 = vmatpush1.bf16.msra.mxu0 0
  %414 = vmatprep.subr.bf16.mxu0 0
  %415 = vmatpush1.bf16.msra.mxu0 0
  %416 = vmatprep.subr.bf16.mxu0 0
  %417 = vmatpush1.bf16.msra.mxu0 0
  %418 = vmatprep.subr.bf16.mxu0 0
  %419 = vmatpush1.bf16.msra.mxu0 0
  %420 = vmatprep.subr.bf16.mxu0 0
  %421 = vmatpush1.bf16.msra.mxu0 0
  %422 = vmatprep.subr.bf16.mxu0 0
  %423 = vmatpush1.bf16.msra.mxu0 0
  %424 = vmatprep.subr.bf16.mxu0 0
  %425 = vmatpush1.bf16.msra.mxu0 0
  %426 = vmatprep.subr.bf16.mxu0 0
  %427 = vmatpush1.bf16.msra.mxu0 0
  %428 = vmatprep.subr.bf16.mxu0 0
  %429 = vmatpush1.bf16.msra.mxu0 0
  %430 = vmatprep.subr.bf16.mxu0 0
  %431 = vmatpush1.bf16.msra.mxu0 0
  %432 = vmatprep.subr.bf16.mxu0 0
  %433 = vmatpush1.bf16.msra.mxu0 0
  %434 = vmatprep.subr.bf16.mxu0 0
  %435 = vmatpush1.bf16.msra.mxu0 0
  %436 = vmatprep.subr.bf16.mxu0 0
  %437 = vmatpush1.bf16.msra.mxu0 0
  %438 = vmatprep.subr.bf16.mxu0 0
  %439 = vmatpush1.bf16.msra.mxu0 0
  %440 = vmatprep.mubr.bf16.mxu0 0
  %441 = vmatmul.mubr.bf16.gmra.mrb[0].mxu0 %v385
  %v442 = vpop.f32.mrb[0].mxu0
  %v443 = vadd.f32 0.0, %v442
  %v444 = vpop.f32.mrb[0].mxu0
  %v445 = vpop.f32.mrb[0].mxu0
  %v446 = vadd.f32 0.0, %v445
  %v447 = vpop.f32.mrb[0].mxu0
  %448 = vmatprep.mubr.bf16.mxu0 0
  %449 = vmatmul.mubr.bf16.gmra.mrb[0].mxu0 %v388
  %v450 = vpop.f32.mrb[0].mxu0
  %v451 = vadd.f32 0.0, %v450
  %v452 = vpop.f32.mrb[0].mxu0
  %v453 = vpop.f32.mrb[0].mxu0
  %v454 = vadd.f32 0.0, %v453
  %v455 = vpop.f32.mrb[0].mxu0
  %456 = vmatprep.mubr.bf16.mxu0 0
  %457 = vmatmul.mubr.bf16.gmra.mrb[0].mxu0 %v391
  %v458 = vpop.f32.mrb[0].mxu0
  %v459 = vadd.f32 0.0, %v458
  %v460 = vpop.f32.mrb[0].mxu0
  %v461 = vpop.f32.mrb[0].mxu0
  %v462 = vadd.f32 0.0, %v461
  %v463 = vpop.f32.mrb[0].mxu0
  %464 = vmatprep.mubr.bf16.mxu0 0
  %465 = vmatmul.mubr.bf16.gmra.mrb[0].mxu0 %v394
  %v466 = vpop.f32.mrb[0].mxu0
  %v467 = vadd.f32 0.0, %v466
  %v468 = vpop.f32.mrb[0].mxu0
  %v469 = vpop.f32.mrb[0].mxu0
  %v470 = vadd.f32 0.0, %v469
  %v471 = vpop.f32.mrb[0].mxu0
  %472 = vmatprep.mubr.bf16.mxu0 0
  %473 = vmatmul.mubr.bf16.gmra.mrb[0].mxu0 %v397
  %v474 = vpop.f32.mrb[0].mxu0
  %v475 = vadd.f32 0.0, %v474
  %v476 = vpop.f32.mrb[0].mxu0
  %v477 = vpop.f32.mrb[0].mxu0
  %v478 = vadd.f32 0.0, %v477
  %v479 = vpop.f32.mrb[0].mxu0
  %480 = vmatprep.mubr.bf16.mxu0 0
  %481 = vmatmul.mubr.bf16.gmra.mrb[0].mxu0 %v400
  %v482 = vpop.f32.mrb[0].mxu0
  %v483 = vadd.f32 0.0, %v482
  %v484 = vpop.f32.mrb[0].mxu0
  %v485 = vpop.f32.mrb[0].mxu0
  %v486 = vadd.f32 0.0, %v485
  %v487 = vpop.f32.mrb[0].mxu0
  %488 = vmatprep.mubr.bf16.mxu0 0
  %489 = vmatmul.mubr.bf16.gmra.mrb[0].mxu0 %v403
  %v490 = vpop.f32.mrb[0].mxu0
  %v491 = vadd.f32 0.0, %v490
  %v492 = vpop.f32.mrb[0].mxu0
  %v493 = vpop.f32.mrb[0].mxu0
  %v494 = vadd.f32 0.0, %v493
  %v495 = vpop.f32.mrb[0].mxu0
  %496 = vmatprep.mubr.bf16.mxu0 0
  %497 = vmatmul.mubr.bf16.gmra.mrb[0].mxu0 %v406
  %v498 = vpop.f32.mrb[0].mxu0
  %v499 = vadd.f32 0.0, %v498
  %v500 = vpop.f32.mrb[0].mxu0
  %v501 = vpop.f32.mrb[0].mxu0
  %v502 = vadd.f32 0.0, %v501
  %v503 = vpop.f32.mrb[0].mxu0
  %504 = vdwg.mxu0
  %v505 = vpack.c.bf16 %v446, %v443
  %v506 = vpack.c.bf16 %v454, %v451
  %v507 = vpack.c.bf16 %v462, %v459
  %v508 = vpack.c.bf16 %v470, %v467
  %v509 = vpack.c.bf16 %v478, %v475
  %v510 = vpack.c.bf16 %v486, %v483
  %v511 = vpack.c.bf16 %v494, %v491
  %v512 = vpack.c.bf16 %v502, %v499
  %v514 = vlaneseq
  %v515 = vshrl.u32 %v514, 7
  %v516 = vsub.s32 0, %v515
  %v517 = vrot.slane %v374, %v516
  %519 = vmatprep.subr.bf16.mxu0 0
  %520 = vmatpush1.bf16.msra.mxu0 %v505
  %521 = vmatprep.subr.bf16.mxu0 0
  %522 = vmatpush1.bf16.msra.mxu0 %v506
  %523 = vmatprep.subr.bf16.mxu0 0
  %524 = vmatpush1.bf16.msra.mxu0 %v507
  %525 = vmatprep.subr.bf16.mxu0 0
  %526 = vmatpush1.bf16.msra.mxu0 %v508
  %527 = vmatprep.subr.bf16.mxu0 0
  %528 = vmatpush1.bf16.msra.mxu0 %v509
  %529 = vmatprep.subr.bf16.mxu0 0
  %530 = vmatpush1.bf16.msra.mxu0 %v510
  %531 = vmatprep.subr.bf16.mxu0 0
  %532 = vmatpush1.bf16.msra.mxu0 %v511
  %533 = vmatprep.subr.bf16.mxu0 0
  %534 = vmatpush1.bf16.msra.mxu0 %v512
  %535 = vmatprep.subr.bf16.mxu0 0
  %536 = vmatpush1.bf16.msra.mxu0 0
  %537 = vmatprep.subr.bf16.mxu0 0
  %538 = vmatpush1.bf16.msra.mxu0 0
  %539 = vmatprep.subr.bf16.mxu0 0
  %540 = vmatpush1.bf16.msra.mxu0 0
  %541 = vmatprep.subr.bf16.mxu0 0
  %542 = vmatpush1.bf16.msra.mxu0 0
  %543 = vmatprep.subr.bf16.mxu0 0
  %544 = vmatpush1.bf16.msra.mxu0 0
  %545 = vmatprep.subr.bf16.mxu0 0
  %546 = vmatpush1.bf16.msra.mxu0 0
  %547 = vmatprep.subr.bf16.mxu0 0
  %548 = vmatpush1.bf16.msra.mxu0 0
  %549 = vmatprep.subr.bf16.mxu0 0
  %550 = vmatpush1.bf16.msra.mxu0 0
  %551 = vmatprep.mubr.bf16.mxu0 0
  %552 = vmatmul.mubr.bf16.gmra.mrb[0].mxu0 %v99
  %v553 = vpop.f32.mrb[0].mxu0
  %v554 = vadd.f32 %v517, %v553
  %v555 = vpop.f32.mrb[0].mxu0
  %v556 = vpop.f32.mrb[0].mxu0
  %v557 = vadd.f32 %v517, %v556
  %v558 = vpop.f32.mrb[0].mxu0
  %559 = vmatprep.mubr.bf16.mxu0 0
  %560 = vmatmul.mubr.bf16.gmra.mrb[0].mxu0 %v100
  %v561 = vpop.f32.mrb[0].mxu0
  %v562 = vadd.f32 %v517, %v561
  %v563 = vpop.f32.mrb[0].mxu0
  %v564 = vpop.f32.mrb[0].mxu0
  %v565 = vadd.f32 %v517, %v564
  %v566 = vpop.f32.mrb[0].mxu0
  %567 = vmatprep.mubr.bf16.mxu0 0
  %568 = vmatmul.mubr.bf16.gmra.mrb[0].mxu0 %v101
  %v569 = vpop.f32.mrb[0].mxu0
  %v570 = vadd.f32 %v517, %v569
  %v571 = vpop.f32.mrb[0].mxu0
  %v572 = vpop.f32.mrb[0].mxu0
  %v573 = vadd.f32 %v517, %v572
  %v574 = vpop.f32.mrb[0].mxu0
  %575 = vmatprep.mubr.bf16.mxu0 0
  %576 = vmatmul.mubr.bf16.gmra.mrb[0].mxu0 %v102
  %v577 = vpop.f32.mrb[0].mxu0
  %v578 = vadd.f32 %v517, %v577
  %v579 = vpop.f32.mrb[0].mxu0
  %v580 = vpop.f32.mrb[0].mxu0
  %v581 = vadd.f32 %v517, %v580
  %v582 = vpop.f32.mrb[0].mxu0
  %583 = vmatprep.mubr.bf16.mxu0 0
  %584 = vmatmul.mubr.bf16.gmra.mrb[0].mxu0 %v103
  %v585 = vpop.f32.mrb[0].mxu0
  %v586 = vadd.f32 %v517, %v585
  %v587 = vpop.f32.mrb[0].mxu0
  %v588 = vpop.f32.mrb[0].mxu0
  %v589 = vadd.f32 %v517, %v588
  %v590 = vpop.f32.mrb[0].mxu0
  %591 = vmatprep.mubr.bf16.mxu0 0
  %592 = vmatmul.mubr.bf16.gmra.mrb[0].mxu0 %v104
  %v593 = vpop.f32.mrb[0].mxu0
  %v594 = vadd.f32 %v517, %v593
  %v595 = vpop.f32.mrb[0].mxu0
  %v596 = vpop.f32.mrb[0].mxu0
  %v597 = vadd.f32 %v517, %v596
  %v598 = vpop.f32.mrb[0].mxu0
  %599 = vmatprep.mubr.bf16.mxu0 0
  %600 = vmatmul.mubr.bf16.gmra.mrb[0].mxu0 %v105
  %v601 = vpop.f32.mrb[0].mxu0
  %v602 = vadd.f32 %v517, %v601
  %v603 = vpop.f32.mrb[0].mxu0
  %v604 = vpop.f32.mrb[0].mxu0
  %v605 = vadd.f32 %v517, %v604
  %v606 = vpop.f32.mrb[0].mxu0
  %607 = vmatprep.mubr.bf16.mxu0 0
  %608 = vmatmul.mubr.bf16.gmra.mrb[0].mxu0 %v106
  %v609 = vpop.f32.mrb[0].mxu0
  %v610 = vadd.f32 %v517, %v609
  %v611 = vpop.f32.mrb[0].mxu0
  %v612 = vpop.f32.mrb[0].mxu0
  %v613 = vadd.f32 %v517, %v612
  %v614 = vpop.f32.mrb[0].mxu0
  %615 = vdwg.mxu0
  %vm616 = vcmask 31744
  %617 = vst.msk [vmem:[%s6] sm:$0xff] %vm616, %v554
  %618 = vst.msk [vmem:[%s6 + $0x8] sm:$0xff] %vm616, %v557
  %619 = vst.msk [vmem:[%s6 + $0x10] sm:$0xff] %vm616, %v562
  %620 = vst.msk [vmem:[%s6 + $0x18] sm:$0xff] %vm616, %v565
  %621 = vst.msk [vmem:[%s6 + $0x20] sm:$0xff] %vm616, %v570
  %622 = vst.msk [vmem:[%s6 + $0x28] sm:$0xff] %vm616, %v573
  %623 = vst.msk [vmem:[%s6 + $0x30] sm:$0xff] %vm616, %v578
  %624 = vst.msk [vmem:[%s6 + $0x38] sm:$0xff] %vm616, %v581
  %625 = vst.msk [vmem:[%s6 + $0x40] sm:$0xff] %vm616, %v586
  %626 = vst.msk [vmem:[%s6 + $0x48] sm:$0xff] %vm616, %v589
  %627 = vst.msk [vmem:[%s6 + $0x50] sm:$0xff] %vm616, %v594
  %628 = vst.msk [vmem:[%s6 + $0x58] sm:$0xff] %vm616, %v597
  %629 = vst.msk [vmem:[%s6 + $0x60] sm:$0xff] %vm616, %v602
  %630 = vst.msk [vmem:[%s6 + $0x68] sm:$0xff] %vm616, %v605
  %631 = vst.msk [vmem:[%s6 + $0x70] sm:$0xff] %vm616, %v610
  %632 = vst.msk [vmem:[%s6 + $0x78] sm:$0xff] %vm616, %v613
  // Predicated region
  $region26: #{tpu_custom_call.1} parent=0 // pred_check
    _
  $region27: #{tpu_custom_call.1} parent=0 // pred_check_branch
    %634 = sbr.rel (0) target = $region29
  $region28: #{tpu_custom_call.1} parent=0 // pred_region
    _
  $region29: #{tpu_custom_call.1} parent=0 // pred_fallthru
    _
  // Predicated region
  $region30: #{tpu_custom_call.1} parent=0 // pred_check
    _
  $region31: #{tpu_custom_call.1} parent=0 // pred_check_branch
    %636 = sbr.rel (0) target = $region33
  $region32: #{tpu_custom_call.1} parent=0 // pred_region
    _
  $region33: #{tpu_custom_call.1} parent=0 // pred_fallthru
    _

</llo_original>
